<compile_context>
chip_gen: v7x
topology: tpu7x:2x2x1
jax: 0.10.0
libtpu: 0.0.40
codegen_flags: <defaults>
</compile_context>

<pallas_src>
import functools

import jax
import jax.numpy as jnp
from jax import lax
from jax.experimental import pallas as pl
from jax.experimental.pallas import tpu as pltpu


def _zero_pad_kernel(x_ref, o_ref, *, left: int, right: int):
    # Pad in registers, then a single full-width unmasked store of the block.
    o_ref[...] = lax.pad(
        x_ref[...],
        jnp.zeros((), o_ref.dtype),
        ((0, 0, 0), (left, right, 0)),
    )


def _vmem_budgets():
    """Return (per-block byte budget, vmem_limit_bytes), generation-gated."""
    try:
        cap = pltpu.get_tpu_info().vmem_capacity_bytes
    except Exception:
        cap = 64 * 1024 * 1024  # conservative: assume v7x-sized per-TC VMEM
    if cap >= 128 * 1024 * 1024:  # v5e / v6e: 128 MiB VMEM
        return 64 * 1024 * 1024, 96 * 1024 * 1024
    # v7x: 64 MiB per TC -> leave headroom for pipeline scratch/semaphores.
    return 24 * 1024 * 1024, 48 * 1024 * 1024


def _choose_row_tile(rows: int, length: int, out_len: int, dtype,
                     block_budget: int) -> int:
    dtype_bytes = jnp.dtype(dtype).itemsize
    # Sublane granularity: 8 rows for 4-byte, 16 for 2-byte, 32 for 1-byte.
    mult = max(8, 8 * (4 // max(dtype_bytes, 1)))
    # Double-buffered input + output blocks per row.
    per_row = 2 * (length + out_len) * dtype_bytes
    max_rows = max(mult, block_budget // max(per_row, 1))
    tile = min(rows, max_rows)
    # Prefer >= 2 grid steps so the "parallel" axis can split across 2 TCs (v7x).
    if tile >= rows and rows >= 2 * mult:
        tile = pl.cdiv(rows, 2)
    if tile >= rows:
        return rows
    tile = max(mult, (tile // mult) * mult)
    return min(tile, rows)


def zero_padding_1d(x: jax.Array, left: int, right: int) -> jax.Array:
    """Pallas equivalent of ZeroPadding1d(left, right).forward(x) for NCL input."""
    n, c, length = x.shape

    # F.pad semantics: negative padding crops. Handle the crop in the wrapper.
    crop_l, crop_r = max(0, -left), max(0, -right)
    pad_l, pad_r = max(0, left), max(0, right)
    if crop_l or crop_r:
        x = x[:, :, crop_l:length - crop_r]
        length = x.shape[-1]
    out_len = length + pad_l + pad_r
    assert length > 0 and out_len > 0, "padding crops away the whole sequence"

    rows = n * c
    x2 = x.reshape(rows, length)

    dtype_bytes = jnp.dtype(x.dtype).itemsize
    block_budget, vmem_limit = _vmem_budgets()
    row_tile = _choose_row_tile(rows, length, out_len, x.dtype, block_budget)
    grid = (pl.cdiv(rows, row_tile),)

    kernel = functools.partial(_zero_pad_kernel, left=pad_l, right=pad_r)

    out2 = pl.pallas_call(
        kernel,
        out_shape=jax.ShapeDtypeStruct((rows, out_len), x.dtype),
        grid_spec=pltpu.PrefetchScalarGridSpec(
            num_scalar_prefetch=0,
            grid=grid,
            in_specs=[pl.BlockSpec((row_tile, length), lambda i: (i, 0))],
            out_specs=pl.BlockSpec((row_tile, out_len), lambda i: (i, 0)),
        ),
        compiler_params=pltpu.CompilerParams(
            dimension_semantics=("parallel",),
            vmem_limit_bytes=vmem_limit,
        ),
        cost_estimate=pl.CostEstimate(
            flops=0,
            transcendentals=0,
            bytes_accessed=rows * (length + out_len) * dtype_bytes,
        ),
    )(x2)

    return out2.reshape(n, c, out_len)


if __name__ == "__main__":
    LEFT, RIGHT = 3, 5  # ZeroPadding1d(left, right) has no learned parameters.

    key = jax.random.PRNGKey(0)
    k0, k1 = jax.random.split(key)

    # Small TCN-style input: (batch=2, channels=4, seq_len=16).
    x = jax.random.normal(k0, (2, 4, 16), dtype=jnp.float32)
    out = jax.block_until_ready(zero_padding_1d(x, LEFT, RIGHT))
    ref = jnp.pad(x, ((0, 0), (0, 0), (LEFT, RIGHT)))
    assert out.shape == (2, 4, 16 + LEFT + RIGHT), out.shape
    assert out.dtype == x.dtype
    assert jnp.array_equal(out, ref), "mismatch vs reference (positive pad)"

    # Exercise a ragged last row-block (rows not a multiple of the row tile).
    x2 = jax.random.normal(k1, (2, 20, 16), dtype=jnp.float32)
    out2 = jax.block_until_ready(zero_padding_1d(x2, LEFT, RIGHT))
    ref2 = jnp.pad(x2, ((0, 0), (0, 0), (LEFT, RIGHT)))
    assert jnp.array_equal(out2, ref2), "mismatch vs reference (ragged rows)"

    # Negative padding == cropping (PyTorch F.pad semantics).
    out3 = jax.block_until_ready(zero_padding_1d(x, -2, 3))
    ref3 = jnp.pad(x[:, :, 2:], ((0, 0), (0, 0), (0, 3)))
    assert jnp.array_equal(out3, ref3), "mismatch vs reference (negative pad)"

    print("KERNEL_OK")
</pallas_src>

<mosaic_0001>
module attributes {stable_mosaic.version = 11 : i64} {
  func.func @_zero_pad_kernel(%arg0: i32, %arg1: memref<8x16xf32, #tpu.memory_space<vmem>>, %arg2: memref<8x24xf32, #tpu.memory_space<vmem>>) attributes {dimension_semantics = [#tpu.dimension_semantics<parallel>], iteration_bounds = array<i64: 1>, scalar_prefetch = 0 : i64, scratch_operands = 0 : i64, tpu.core_type = #tpu.core_type<tc>, window_params = [{transform_indices = @transform_0, window_bounds = array<i64: 8, 16>}, {transform_indices = @transform_1, window_bounds = array<i64: 8, 24>}]} {
    %c0 = arith.constant 0 : index
    %c0_0 = arith.constant 0 : index
    %0 = vector.load %arg1[%c0, %c0_0] : memref<8x16xf32, #tpu.memory_space<vmem>>, vector<8x16xf32>
    %cst = arith.constant 0.000000e+00 : f32
    %1 = vector.broadcast %cst : f32 to vector<8x3xf32>
    %2 = tpu.concatenate %1, %0 in 1 : vector<8x3xf32>, vector<8x16xf32> -> vector<8x19xf32>
    %3 = vector.broadcast %cst : f32 to vector<8x5xf32>
    %4 = tpu.concatenate %2, %3 in 1 : vector<8x19xf32>, vector<8x5xf32> -> vector<8x24xf32>
    %c0_1 = arith.constant 0 : index
    %c0_2 = arith.constant 0 : index
    %5 = vector.load %arg2[%c0_1, %c0_2] : memref<8x24xf32, #tpu.memory_space<vmem>>, vector<8x24xf32>
    tpu.vector_store %arg2[%c0_1, %c0_2], %4 {strides = array<i32>} : memref<8x24xf32, #tpu.memory_space<vmem>>, vector<8x24xf32>,
    return
  }
  func.func @transform_0(%arg0: i32) -> (i32, i32) {
    %c0_i32 = arith.constant 0 : i32
    %c0_i32_0 = arith.constant 0 : i32
    return %arg0, %c0_i32 : i32, i32
  }
  func.func @transform_1(%arg0: i32) -> (i32, i32) {
    %c0_i32 = arith.constant 0 : i32
    %c0_i32_0 = arith.constant 0 : i32
    return %arg0, %c0_i32 : i32, i32
  }
}

</mosaic_0001>

<llo_original>
// kernel: tpu_custom_call.1
$region0: #{tpu_custom_call.1}
  #allocation0 [shape = 'u32[]', space=smem, size = 0x4, offset = 0x4, fixed_abs, tag = 'smem constant byte address 0x4 - core index']
  #allocation1 [shape = 'u32[144,128]{1,0:T(1,128)}', space=vmem, size = 0x12000, scoped, tag = 'internal scratch']
  %s0 = inlined_call_operand.hbm [shape: f32[8,16], index: 0, kind: input, shape index: {}]
  %s1 = inlined_call_operand.hbm [shape: f32[8,24], index: 1, kind: output, shape index: {}]
  %s2 = sld [smem:[#allocation0]]
  $region18: #{tpu_custom_call.1} parent=0
    _
  %s4 = ssub.s32 1, %s2
  %s5 = scalar_select 0, %s4, %s2
  $region1: #{tpu_custom_call.1} parent=0
    #allocation2 [shape = 'u8[4096]{0}', space=vmem, size = 0x1000, scoped, tag = 'input window, operand 0, single buffered']
    #allocation3 [shape = 's32[1]{0}', space=sflag, size = 0x4, scoped, tag = 'scoped memory for tpu_custom_call.1']
    #allocation4 [shape = 's32[1]{0}', space=sflag, size = 0x4, scoped, tag = 'scoped memory for tpu_custom_call.1']
    #allocation5 [shape = 'u8[4096]{0}', space=vmem, size = 0x1000, scoped, tag = 'output window, operand 0, single buffered']
    %6 = vsyncpa [#allocation3], 0
    %7 = vsyncpa [#allocation4], 0
    // Predicated region
    $region2: #{tpu_custom_call.1} parent=1 // pred_check
      _
    $region3: #{tpu_custom_call.1} parent=1 // pred_check_branch
      %9 = sbr.rel (0) target = $region5
    $region4: #{tpu_custom_call.1} parent=1 // pred_region
      %s11 = ssub.s32 128, 128
      %12 = vsyncadd [#allocation3], %s11
      %s14 = sshll.u32 [#allocation2], 4
      %s15 = int_to_ptr.vmem [resolvable:$true] %s14
      %17 = dma.hbm_to_vmem [thread:$0]  %s0, 128, %s15, [#allocation3]
    $region5: #{tpu_custom_call.1} parent=1 // pred_fallthru
      _
    // Predicated region
    $region6: #{tpu_custom_call.1} parent=1 // pred_check
      _
    $region7: #{tpu_custom_call.1} parent=1 // pred_check_branch
      %19 = sbr.rel (0) target = $region9
    $region8: #{tpu_custom_call.1} parent=1 // pred_region
      %20 = dma.done [#allocation3], 128
    $region9: #{tpu_custom_call.1} parent=1 // pred_fallthru
      _
    %v21 = vld [vmem:[#allocation2] sm:$0xff]
    %23 = vrot.lane.b32.xlu0 %v21, 3
    %v24 = vpop.permute.xlu0 %23
    %vm26 = vcmask 23552
    %v27 = vsel %vm26, 0.0, %v24
    %vm28 = vcmask 154624
    %v29 = vsel %vm28, %v27, 0.0
    %vm30 = vcmask 195584
    %31 = vst.msk [vmem:[#allocation5] sm:$0xff] %vm30, %v29
    // Predicated region
    $region10: #{tpu_custom_call.1} parent=1 // pred_check
      _
    $region11: #{tpu_custom_call.1} parent=1 // pred_check_branch
      %33 = sbr.rel (0) target = $region13
    $region12: #{tpu_custom_call.1} parent=1 // pred_region
      %s35 = ssub.s32 128, 128
      %36 = vsyncadd [#allocation4], %s35
      %s38 = sshll.u32 [#allocation5], 4
      %s39 = int_to_ptr.vmem [resolvable:$true] %s38
      %41 = dma.vmem_to_hbm [thread:$0]  %s39, 128, %s1, [#allocation4]
    $region13: #{tpu_custom_call.1} parent=1 // pred_fallthru
      _
    // Predicated region
    $region14: #{tpu_custom_call.1} parent=1 // pred_check
      _
    $region15: #{tpu_custom_call.1} parent=1 // pred_check_branch
      %43 = sbr.rel (0) target = $region17
    $region16: #{tpu_custom_call.1} parent=1 // pred_region
      %44 = dma.done [#allocation4], 128
    $region17: #{tpu_custom_call.1} parent=1 // pred_fallthru
      _
    %45 = vsyncpa [#allocation3], 1
    %46 = vsyncpa [#allocation4], 1

</llo_original>
